<compile_context>
chip_gen: v5e
topology: v5e:2x2
jax: 0.10.0
libtpu: 0.0.40
codegen_flags: <defaults>
</compile_context>

<pallas_src>
import jax
import jax.numpy as jnp
from jax.experimental import pallas as pl
from jax.experimental.pallas import tpu as pltpu


def _round_up(n, m):
    return ((n + m - 1) // m) * m


def _choose_batch_tile(B, batch_tile):
    """Sublane-aligned batch tile; prefer >= 2 even grid steps (feeds both v7x
    TensorCores; neutral on single-TC v5e/v6e)."""
    if B <= 8:
        return 8
    tb = _round_up(pl.cdiv(B, 2), 8)          # two roughly-even steps
    return min(tb, _round_up(batch_tile, 8))


def cnn_last_kernel(xcol_ref, w1_ref, b1_ref, w2_ref, b2_ref, wo_ref, bo_ref,
                    out_ref):
    """Fused: conv1+ReLU (only the T1 timesteps that reach the output) ->
    conv2+ReLU at the last timestep -> linear head.
    All matmuls: bf16 operands, lane-dense, f32 accumulation.

    Shapes (lane/sublane padded):
      xcol_ref: [T1, TB, KCp]    im2col rows, tap-major       (T1 = pad+1)
      w1_ref:   [KCp, H1p]       flattened conv1 weights      (bf16)
      w2_ref:   [T1*H1p, H2p]    conv2 taps for the last step (bf16)
      wo_ref:   [H2p, Op]        output head                  (bf16)
      b*_ref:   [1, *]           biases (f32)
      out_ref:  [TB, Op]         f32
    """
    T1, TB, KCp = xcol_ref.shape

    # Layer 1: one MXU matmul over all taps.  Leading-dim merge is layout-free
    # (TB % 8 == 0, KCp % 128 == 0).
    x2d = xcol_ref[...].reshape(T1 * TB, KCp)
    h1 = jnp.dot(x2d, w1_ref[...], preferred_element_type=jnp.float32)
    h1 = jnp.maximum(h1 + b1_ref[...], 0.0)                      # [T1*TB, H1p]

    # Rearrange to [TB, T1*H1p] via a static, tile-aligned lane concat so
    # layer 2 is one contraction of depth T1*H1p (256 for K=3 — exactly one
    # 256-deep MXU pass on v6e/v7x).  No VMEM accumulator round-trip.
    h1_cat = jnp.concatenate(
        [h1[t * TB:(t + 1) * TB, :] for t in range(T1)], axis=-1)
    h1_cat = h1_cat.astype(w2_ref.dtype)
    h2 = jnp.dot(h1_cat, w2_ref[...], preferred_element_type=jnp.float32)
    h2 = jnp.maximum(h2 + b2_ref[...], 0.0).astype(wo_ref.dtype)  # [TB, H2p]

    # Output head; Op is a multiple of 128 -> unmasked, lane-dense store.
    out_ref[...] = (jnp.dot(h2, wo_ref[...], preferred_element_type=jnp.float32)
                    + bo_ref[...])


def pack_params(params, kernel_size):
    """One-time weight packing (zero-pad to 128 lanes, flatten conv1 to im2col
    layout, select + flatten the conv2 taps that reach the last timestep,
    cast MXU operands to bf16)."""
    w1, b1, w2, b2, wo, bo = params
    K = kernel_size
    assert K % 2 == 1, "padding='same' here assumes odd kernel_size"
    pad = (K - 1) // 2
    T1 = pad + 1
    Cin, H1 = w1.shape[1], w1.shape[2]
    H2 = w2.shape[2]
    O = wo.shape[1]

    KC = K * Cin
    KCp = _round_up(KC, 128)
    H1p = _round_up(H1, 128)
    H2p = _round_up(H2, 128)
    Op = _round_up(O, 128)

    w1f = (jnp.zeros((KCp, H1p), jnp.float32)
           .at[:KC, :H1].set(w1.reshape(KC, H1)).astype(jnp.bfloat16))
    b1f = jnp.zeros((1, H1p), jnp.float32).at[:, :H1].set(b1.reshape(1, H1))
    w2f = (jnp.zeros((T1, H1p, H2p), jnp.float32)
           .at[:, :H1, :H2].set(w2[:T1].astype(jnp.float32))
           .reshape(T1 * H1p, H2p).astype(jnp.bfloat16))
    b2f = jnp.zeros((1, H2p), jnp.float32).at[:, :H2].set(b2.reshape(1, H2))
    wof = (jnp.zeros((H2p, Op), jnp.float32)
           .at[:H2, :O].set(wo).astype(jnp.bfloat16))
    bof = jnp.zeros((1, Op), jnp.float32).at[:, :O].set(bo.reshape(1, O))

    dims = dict(K=K, pad=pad, T1=T1, Cin=Cin, KC=KC, KCp=KCp,
                H1p=H1p, H2p=H2p, O=O, Op=Op)
    return (w1f, b1f, w2f, b2f, wof, bof), dims


def cnn_base_forward(x_ncw, packed, dims, *, batch_tile=1024):
    """x_ncw: [B, C_in, L] (PyTorch NCW). Returns [B, output_size] float32."""
    w1f, b1f, w2f, b2f, wof, bof = packed
    K, pad, T1 = dims["K"], dims["pad"], dims["T1"]
    KC, KCp = dims["KC"], dims["KCp"]
    H1p, H2p, O, Op = dims["H1p"], dims["H2p"], dims["O"], dims["Op"]

    B, Cin, L = x_ncw.shape
    assert Cin == dims["Cin"]
    assert L >= K, "sequence shorter than kernel_size not handled"

    TB = _choose_batch_tile(B, batch_tile)
    nb = pl.cdiv(B, TB)
    Bp = nb * TB

    # --- im2col of the tail window only (slice BEFORE transposing: prep HBM
    #     traffic is B*Cin*K, not B*Cin*L) -----------------------------------
    x_tail = jnp.transpose(x_ncw[:, :, L - K:], (0, 2, 1)).astype(jnp.float32)
    win = jnp.concatenate(
        [x_tail, jnp.zeros((B, pad, Cin), jnp.float32)], axis=1)  # [B, K+pad, Cin]
    taps = [win[:, t:t + K, :].reshape(B, KC) for t in range(T1)]
    xcol = jnp.stack(taps, axis=0)                                # [T1, B, KC]
    xcol = jnp.pad(xcol, ((0, 0), (0, Bp - B), (0, KCp - KC)))
    xcol = xcol.astype(jnp.bfloat16)

    # Double-buffered VMEM footprint (bf16 operands, f32 out/biases) + margin.
    block_bytes = (T1 * TB * KCp * 2
                   + TB * Op * 4
                   + (KCp * H1p + T1 * H1p * H2p + H2p * Op) * 2
                   + (H1p + H2p + Op) * 4)
    vmem_limit = int(min(max(2 * block_bytes + (2 << 20), 16 << 20), 64 << 20))

    out_p = pl.pallas_call(
        cnn_last_kernel,
        out_shape=jax.ShapeDtypeStruct((Bp, Op), jnp.float32),
        grid=(nb,),
        in_specs=[
            pl.BlockSpec((T1, TB, KCp), lambda i: (0, i, 0)),
            pl.BlockSpec((KCp, H1p), lambda i: (0, 0)),
            pl.BlockSpec((1, H1p), lambda i: (0, 0)),
            pl.BlockSpec((T1 * H1p, H2p), lambda i: (0, 0)),
            pl.BlockSpec((1, H2p), lambda i: (0, 0)),
            pl.BlockSpec((H2p, Op), lambda i: (0, 0)),
            pl.BlockSpec((1, Op), lambda i: (0, 0)),
        ],
        out_specs=pl.BlockSpec((TB, Op), lambda i: (i, 0)),
        compiler_params=pltpu.CompilerParams(
            dimension_semantics=("parallel",),
            vmem_limit_bytes=vmem_limit),
    )(xcol, w1f, b1f, w2f, b2f, wof, bof)

    return out_p[:B, :O]


def init_params(key, input_size, num_channels, kernel_size, output_size):
    H1, H2 = num_channels
    ks = jax.random.split(key, 6)
    w1 = 0.1 * jax.random.normal(ks[0], (kernel_size, input_size, H1), jnp.float32)
    b1 = 0.01 * jax.random.normal(ks[1], (1, 1, H1), jnp.float32)
    w2 = 0.1 * jax.random.normal(ks[2], (kernel_size, H1, H2), jnp.float32)
    b2 = 0.01 * jax.random.normal(ks[3], (1, 1, H2), jnp.float32)
    wo = 0.1 * jax.random.normal(ks[4], (H2, output_size), jnp.float32)
    bo = 0.01 * jax.random.normal(ks[5], (1, output_size), jnp.float32)
    return (w1, b1, w2, b2, wo, bo)


def reference_forward(x_ncw, params, kernel_size, *, emulate_bf16=True):
    """Pure-JAX reference of the FULL conv stack (not last-step-reduced).
    With emulate_bf16=True the MXU operands are rounded to bf16 exactly as the
    kernel does (accumulation stays f32)."""
    w1, b1, w2, b2, wo, bo = params
    K = kernel_size
    pad = (K - 1) // 2

    def mxu(a):
        a = a.astype(jnp.float32)
        return a.astype(jnp.bfloat16).astype(jnp.float32) if emulate_bf16 else a

    x = jnp.transpose(x_ncw, (0, 2, 1)).astype(jnp.float32)
    L = x.shape[1]

    def conv(inp, w, b):
        ip = jnp.pad(mxu(inp), ((0, 0), (pad, pad), (0, 0)))
        acc = sum(jnp.einsum('blc,ch->blh', ip[:, k:k + L, :], mxu(w[k]),
                             preferred_element_type=jnp.float32)
                  for k in range(K))
        return jnp.maximum(acc + b.reshape(1, 1, -1), 0.0)

    h2 = conv(conv(x, w1, b1), w2, b2)
    return (jnp.einsum('bh,ho->bo', mxu(h2[:, -1, :]), mxu(wo),
                       preferred_element_type=jnp.float32) + bo.reshape(1, -1))


if __name__ == "__main__":
    batch = 2
    input_size = 4
    seq_len = 16
    config = {"output_size": 5, "num_channels": [8, 8],
              "kernel_size": 3, "self_attention": False}

    key = jax.random.PRNGKey(0)
    kx, kp = jax.random.split(key)
    x = jax.random.normal(kx, (batch, input_size, seq_len), jnp.float32)  # NCW
    params = init_params(kp, input_size, config["num_channels"],
                         config["kernel_size"], config["output_size"])

    packed, dims = pack_params(params, config["kernel_size"])  # one-time packing
    out = cnn_base_forward(x, packed, dims)
    out = jax.block_until_ready(out)

    ref = reference_forward(x, params, config["kernel_size"], emulate_bf16=True)
    assert out.shape == (batch, config["output_size"])
    assert jnp.allclose(out, ref, atol=1e-3, rtol=1e-3), "mismatch vs reference"

    print("KERNEL_OK")
</pallas_src>

<mosaic_0001>
module attributes {stable_mosaic.version = 11 : i64} {
  func.func @cnn_last_kernel(%arg0: i32, %arg1: memref<2x8x128xbf16, #tpu.memory_space<vmem>>, %arg2: memref<128x128xbf16, #tpu.memory_space<vmem>>, %arg3: memref<1x128xf32, #tpu.memory_space<vmem>>, %arg4: memref<256x128xbf16, #tpu.memory_space<vmem>>, %arg5: memref<1x128xf32, #tpu.memory_space<vmem>>, %arg6: memref<128x128xbf16, #tpu.memory_space<vmem>>, %arg7: memref<1x128xf32, #tpu.memory_space<vmem>>, %arg8: memref<8x128xf32, #tpu.memory_space<vmem>>) attributes {dimension_semantics = [#tpu.dimension_semantics<parallel>], iteration_bounds = array<i64: 1>, scalar_prefetch = 0 : i64, scratch_operands = 0 : i64, tpu.core_type = #tpu.core_type<tc>, window_params = [{transform_indices = @transform_0, window_bounds = array<i64: 2, 8, 128>}, {pipeline_mode = #tpu.pipeline_mode<synchronous>, transform_indices = @transform_1, window_bounds = array<i64: 128, 128>}, {pipeline_mode = #tpu.pipeline_mode<synchronous>, transform_indices = @transform_2, window_bounds = array<i64: 1, 128>}, {pipeline_mode = #tpu.pipeline_mode<synchronous>, transform_indices = @transform_3, window_bounds = array<i64: 256, 128>}, {pipeline_mode = #tpu.pipeline_mode<synchronous>, transform_indices = @transform_4, window_bounds = array<i64: 1, 128>}, {pipeline_mode = #tpu.pipeline_mode<synchronous>, transform_indices = @transform_5, window_bounds = array<i64: 128, 128>}, {pipeline_mode = #tpu.pipeline_mode<synchronous>, transform_indices = @transform_6, window_bounds = array<i64: 1, 128>}, {transform_indices = @transform_7, window_bounds = array<i64: 8, 128>}]} {
    %c0 = arith.constant 0 : index
    %c0_0 = arith.constant 0 : index
    %c0_1 = arith.constant 0 : index
    %0 = vector.load %arg1[%c0, %c0_0, %c0_1] : memref<2x8x128xbf16, #tpu.memory_space<vmem>>, vector<2x8x128xbf16>
    %1 = vector.shape_cast %0 : vector<2x8x128xbf16> to vector<16x128xbf16>
    %c0_2 = arith.constant 0 : index
    %c0_3 = arith.constant 0 : index
    %2 = vector.load %arg2[%c0_2, %c0_3] : memref<128x128xbf16, #tpu.memory_space<vmem>>, vector<128x128xbf16>
    %cst = arith.constant dense<0.000000e+00> : vector<16x128xf32>
    %3 = tpu.matmul %1, %2, %cst {dimension_numbers = #tpu.dot_dimension_numbers<[1], [0], [0], [1], [0, 0, 1, 1], [], []>} : vector<16x128xbf16>, vector<128x128xbf16>, vector<16x128xf32> -> vector<16x128xf32>
    %c0_4 = arith.constant 0 : index
    %c0_5 = arith.constant 0 : index
    %4 = vector.load %arg3[%c0_4, %c0_5] : memref<1x128xf32, #tpu.memory_space<vmem>>, vector<1x128xf32>
    %5 = vector.broadcast %4 : vector<1x128xf32> to vector<16x128xf32>
    %6 = arith.addf %3, %5 : vector<16x128xf32>
    %cst_6 = arith.constant 0.000000e+00 : f32
    %7 = vector.broadcast %cst_6 : f32 to vector<16x128xf32>
    %8 = arith.maximumf %6, %7 : vector<16x128xf32>
    %9 = vector.extract_strided_slice %8 {offsets = [0, 0], sizes = [8, 128], strides = [1, 1]} : vector<16x128xf32> to vector<8x128xf32>
    %10 = vector.extract_strided_slice %8 {offsets = [8, 0], sizes = [8, 128], strides = [1, 1]} : vector<16x128xf32> to vector<8x128xf32>
    %11 = tpu.concatenate %9, %10 in 1 : vector<8x128xf32>, vector<8x128xf32> -> vector<8x256xf32>
    %12 = arith.truncf %11 : vector<8x256xf32> to vector<8x256xbf16>
    %c0_7 = arith.constant 0 : index
    %c0_8 = arith.constant 0 : index
    %13 = vector.load %arg4[%c0_7, %c0_8] : memref<256x128xbf16, #tpu.memory_space<vmem>>, vector<256x128xbf16>
    %cst_9 = arith.constant dense<0.000000e+00> : vector<8x128xf32>
    %14 = tpu.matmul %12, %13, %cst_9 {dimension_numbers = #tpu.dot_dimension_numbers<[1], [0], [0], [1], [0, 0, 1, 1], [], []>} : vector<8x256xbf16>, vector<256x128xbf16>, vector<8x128xf32> -> vector<8x128xf32>
    %c0_10 = arith.constant 0 : index
    %c0_11 = arith.constant 0 : index
    %15 = vector.load %arg5[%c0_10, %c0_11] : memref<1x128xf32, #tpu.memory_space<vmem>>, vector<1x128xf32>
    %16 = vector.broadcast %15 : vector<1x128xf32> to vector<8x128xf32>
    %17 = arith.addf %14, %16 : vector<8x128xf32>
    %cst_12 = arith.constant 0.000000e+00 : f32
    %18 = vector.broadcast %cst_12 : f32 to vector<8x128xf32>
    %19 = arith.maximumf %17, %18 : vector<8x128xf32>
    %20 = arith.truncf %19 : vector<8x128xf32> to vector<8x128xbf16>
    %c0_13 = arith.constant 0 : index
    %c0_14 = arith.constant 0 : index
    %21 = vector.load %arg6[%c0_13, %c0_14] : memref<128x128xbf16, #tpu.memory_space<vmem>>, vector<128x128xbf16>
    %cst_15 = arith.constant dense<0.000000e+00> : vector<8x128xf32>
    %22 = tpu.matmul %20, %21, %cst_15 {dimension_numbers = #tpu.dot_dimension_numbers<[1], [0], [0], [1], [0, 0, 1, 1], [], []>} : vector<8x128xbf16>, vector<128x128xbf16>, vector<8x128xf32> -> vector<8x128xf32>
    %c0_16 = arith.constant 0 : index
    %c0_17 = arith.constant 0 : index
    %23 = vector.load %arg7[%c0_16, %c0_17] : memref<1x128xf32, #tpu.memory_space<vmem>>, vector<1x128xf32>
    %24 = vector.broadcast %23 : vector<1x128xf32> to vector<8x128xf32>
    %25 = arith.addf %22, %24 : vector<8x128xf32>
    %c0_18 = arith.constant 0 : index
    %c0_19 = arith.constant 0 : index
    %26 = vector.load %arg8[%c0_18, %c0_19] : memref<8x128xf32, #tpu.memory_space<vmem>>, vector<8x128xf32>
    tpu.vector_store %arg8[%c0_18, %c0_19], %25 {strides = array<i32>} : memref<8x128xf32, #tpu.memory_space<vmem>>, vector<8x128xf32>,
    return
  }
  func.func @transform_0(%arg0: i32) -> (i32, i32, i32) {
    %c0_i32 = arith.constant 0 : i32
    %c0_i32_0 = arith.constant 0 : i32
    %c0_i32_1 = arith.constant 0 : i32
    return %c0_i32, %arg0, %c0_i32_0 : i32, i32, i32
  }
  func.func @transform_1(%arg0: i32) -> (i32, i32) {
    %c0_i32 = arith.constant 0 : i32
    %c0_i32_0 = arith.constant 0 : i32
    %c0_i32_1 = arith.constant 0 : i32
    return %c0_i32, %c0_i32_0 : i32, i32
  }
  func.func @transform_2(%arg0: i32) -> (i32, i32) {
    %c0_i32 = arith.constant 0 : i32
    %c0_i32_0 = arith.constant 0 : i32
    %c0_i32_1 = arith.constant 0 : i32
    return %c0_i32, %c0_i32_0 : i32, i32
  }
  func.func @transform_3(%arg0: i32) -> (i32, i32) {
    %c0_i32 = arith.constant 0 : i32
    %c0_i32_0 = arith.constant 0 : i32
    %c0_i32_1 = arith.constant 0 : i32
    return %c0_i32, %c0_i32_0 : i32, i32
  }
  func.func @transform_4(%arg0: i32) -> (i32, i32) {
    %c0_i32 = arith.constant 0 : i32
    %c0_i32_0 = arith.constant 0 : i32
    %c0_i32_1 = arith.constant 0 : i32
    return %c0_i32, %c0_i32_0 : i32, i32
  }
  func.func @transform_5(%arg0: i32) -> (i32, i32) {
    %c0_i32 = arith.constant 0 : i32
    %c0_i32_0 = arith.constant 0 : i32
    %c0_i32_1 = arith.constant 0 : i32
    return %c0_i32, %c0_i32_0 : i32, i32
  }
  func.func @transform_6(%arg0: i32) -> (i32, i32) {
    %c0_i32 = arith.constant 0 : i32
    %c0_i32_0 = arith.constant 0 : i32
    %c0_i32_1 = arith.constant 0 : i32
    return %c0_i32, %c0_i32_0 : i32, i32
  }
  func.func @transform_7(%arg0: i32) -> (i32, i32) {
    %c0_i32 = arith.constant 0 : i32
    %c0_i32_0 = arith.constant 0 : i32
    return %arg0, %c0_i32 : i32, i32
  }
}

</mosaic_0001>

<llo_original>
// kernel: tpu_custom_call.1
$region0: #{tpu_custom_call.1}
  #allocation0 [shape = 'u32[]', space=smem, size = 0x4, offset = 0x4, fixed_abs, tag = 'smem constant byte address 0x4 - core index']
  #allocation1 [shape = 'u32[72,128]{1,0:T(1,128)}', space=vmem, size = 0x9000, scoped, tag = 'internal scratch']
  %s0 = inlined_call_operand.hbm [shape: bf16[2,8,128], index: 0, kind: input, shape index: {}]
  %s1 = inlined_call_operand.hbm [shape: bf16[128,128], index: 1, kind: input, shape index: {}]
  %s2 = inlined_call_operand.vmem [shape: f32[1,128], index: 2, kind: input, shape index: {}]
  %s3 = inlined_call_operand.hbm [shape: bf16[256,128], index: 3, kind: input, shape index: {}]
  %s4 = inlined_call_operand.vmem [shape: f32[1,128], index: 4, kind: input, shape index: {}]
  %s5 = inlined_call_operand.hbm [shape: bf16[128,128], index: 5, kind: input, shape index: {}]
  %s6 = inlined_call_operand.vmem [shape: f32[1,128], index: 6, kind: input, shape index: {}]
  %s7 = inlined_call_operand.hbm [shape: f32[8,128], index: 7, kind: output, shape index: {}]
  %s8 = sld [smem:[#allocation0]]
  $region54: #{tpu_custom_call.1} parent=0
    _
  %s10 = ssub.s32 1, %s8
  %s11 = scalar_select 0, %s10, %s8
  $region1: #{tpu_custom_call.1} parent=0
    #allocation2 [shape = 'u8[4096]{0}', space=vmem, size = 0x1000, scoped, tag = 'input window, operand 0, single buffered']
    #allocation3 [shape = 's32[1]{0}', space=sflag, size = 0x4, scoped, tag = 'scoped memory for tpu_custom_call.1']
    #allocation4 [shape = 's32[1]{0}', space=sflag, size = 0x4, scoped, tag = 'scoped memory for tpu_custom_call.1']
    #allocation5 [shape = 'u8[32768]{0}', space=vmem, size = 0x8000, scoped, tag = 'input window, operand 1, single buffered']
    #allocation6 [shape = 's32[1]{0}', space=sflag, size = 0x4, scoped, tag = 'scoped memory for tpu_custom_call.1']
    #allocation7 [shape = 'u8[65536]{0}', space=vmem, size = 0x10000, scoped, tag = 'input window, operand 3, single buffered']
    #allocation8 [shape = 'u8[32768]{0}', space=vmem, size = 0x8000, scoped, tag = 'input window, operand 5, single buffered']
    #allocation9 [shape = 's32[1]{0}', space=sflag, size = 0x4, scoped, tag = 'scoped memory for tpu_custom_call.1']
    #allocation10 [shape = 'u8[4096]{0}', space=vmem, size = 0x1000, scoped, tag = 'output window, operand 0, single buffered']
    %12 = vsyncpa [#allocation3], 0
    %13 = vsyncpa [#allocation6], 0
    %14 = vsyncpa [#allocation9], 0
    %15 = vsyncpa [#allocation4], 0
    // Predicated region
    $region2: #{tpu_custom_call.1} parent=1 // pred_check
      _
    $region3: #{tpu_custom_call.1} parent=1 // pred_check_branch
      %17 = sbr.rel (0) target = $region5
    $region4: #{tpu_custom_call.1} parent=1 // pred_region
      %19 = vsyncadd [#allocation3], 0
      %s20 = sshll.u32 %s0, 4
      %s21 = int_to_ptr.hbm [resolvable:$true] %s20
      %s22 = sshll.u32 [#allocation2], 4
      %s23 = int_to_ptr.vmem [resolvable:$true] %s22
      %28 = dma.hbm_to_vmem [thread:$0]  %s21, 128, %s23, [#allocation3], 64, 64, 4
    $region5: #{tpu_custom_call.1} parent=1 // pred_fallthru
      _
    // Predicated region
    $region6: #{tpu_custom_call.1} parent=1 // pred_check
      _
    $region7: #{tpu_custom_call.1} parent=1 // pred_check_branch
      %30 = sbr.rel (0) target = $region9
    $region8: #{tpu_custom_call.1} parent=1 // pred_region
      %32 = vsyncadd [#allocation6], 0
      %s33 = sshll.u32 %s1, 4
      %s34 = int_to_ptr.hbm [resolvable:$true] %s33
      %s35 = sshll.u32 [#allocation5], 4
      %s36 = int_to_ptr.vmem [resolvable:$true] %s35
      %41 = dma.hbm_to_vmem [thread:$0]  %s34, 1024, %s36, [#allocation6], 64, 64, 4
    $region9: #{tpu_custom_call.1} parent=1 // pred_fallthru
      _
    // Predicated region
    $region10: #{tpu_custom_call.1} parent=1 // pred_check
      _
    $region11: #{tpu_custom_call.1} parent=1 // pred_check_branch
      %43 = sbr.rel (0) target = $region13
    $region12: #{tpu_custom_call.1} parent=1 // pred_region
      _
    $region13: #{tpu_custom_call.1} parent=1 // pred_fallthru
      _
    // Predicated region
    $region14: #{tpu_custom_call.1} parent=1 // pred_check
      _
    $region15: #{tpu_custom_call.1} parent=1 // pred_check_branch
      %45 = sbr.rel (0) target = $region17
    $region16: #{tpu_custom_call.1} parent=1 // pred_region
      %47 = vsyncadd [#allocation6], 0
      %s48 = sshll.u32 %s3, 4
      %s49 = int_to_ptr.hbm [resolvable:$true] %s48
      %s50 = sshll.u32 [#allocation7], 4
      %s51 = int_to_ptr.vmem [resolvable:$true] %s50
      %56 = dma.hbm_to_vmem [thread:$0]  %s49, 2048, %s51, [#allocation6], 64, 64, 4
    $region17: #{tpu_custom_call.1} parent=1 // pred_fallthru
      _
    // Predicated region
    $region18: #{tpu_custom_call.1} parent=1 // pred_check
      _
    $region19: #{tpu_custom_call.1} parent=1 // pred_check_branch
      %58 = sbr.rel (0) target = $region21
    $region20: #{tpu_custom_call.1} parent=1 // pred_region
      _
    $region21: #{tpu_custom_call.1} parent=1 // pred_fallthru
      _
    // Predicated region
    $region22: #{tpu_custom_call.1} parent=1 // pred_check
      _
    $region23: #{tpu_custom_call.1} parent=1 // pred_check_branch
      %60 = sbr.rel (0) target = $region25
    $region24: #{tpu_custom_call.1} parent=1 // pred_region
      %62 = vsyncadd [#allocation9], 0
      %s63 = sshll.u32 %s5, 4
      %s64 = int_to_ptr.hbm [resolvable:$true] %s63
      %s65 = sshll.u32 [#allocation8], 4
      %s66 = int_to_ptr.vmem [resolvable:$true] %s65
      %71 = dma.hbm_to_vmem [thread:$0]  %s64, 1024, %s66, [#allocation9], 64, 64, 4
    $region25: #{tpu_custom_call.1} parent=1 // pred_fallthru
      _
    // Predicated region
    $region26: #{tpu_custom_call.1} parent=1 // pred_check
      _
    $region27: #{tpu_custom_call.1} parent=1 // pred_check_branch
      %73 = sbr.rel (0) target = $region29
    $region28: #{tpu_custom_call.1} parent=1 // pred_region
      _
    $region29: #{tpu_custom_call.1} parent=1 // pred_fallthru
      _
    // Predicated region
    $region30: #{tpu_custom_call.1} parent=1 // pred_check
      _
    $region31: #{tpu_custom_call.1} parent=1 // pred_check_branch
      %75 = sbr.rel (0) target = $region33
    $region32: #{tpu_custom_call.1} parent=1 // pred_region
      %77 = dma.done [#allocation3], 128
    $region33: #{tpu_custom_call.1} parent=1 // pred_fallthru
      _
    // Predicated region
    $region34: #{tpu_custom_call.1} parent=1 // pred_check
      _
    $region35: #{tpu_custom_call.1} parent=1 // pred_check_branch
      %79 = sbr.rel (0) target = $region37
    $region36: #{tpu_custom_call.1} parent=1 // pred_region
      %81 = dma.done [#allocation6], 1024
    $region37: #{tpu_custom_call.1} parent=1 // pred_fallthru
      _
    // Predicated region
    $region38: #{tpu_custom_call.1} parent=1 // pred_check
      _
    $region39: #{tpu_custom_call.1} parent=1 // pred_check_branch
      %83 = sbr.rel (0) target = $region41
    $region40: #{tpu_custom_call.1} parent=1 // pred_region
      %85 = dma.done [#allocation6], 2048
    $region41: #{tpu_custom_call.1} parent=1 // pred_fallthru
      _
    // Predicated region
    $region42: #{tpu_custom_call.1} parent=1 // pred_check
      _
    $region43: #{tpu_custom_call.1} parent=1 // pred_check_branch
      %87 = sbr.rel (0) target = $region45
    $region44: #{tpu_custom_call.1} parent=1 // pred_region
      %89 = dma.done [#allocation9], 1024
    $region45: #{tpu_custom_call.1} parent=1 // pred_fallthru
      _
    %v90 = vld [vmem:[#allocation2] sm:$0xf]
    %v91 = vld [vmem:[#allocation2 + $0x4] sm:$0xf]
    %v92 = vld [vmem:[#allocation5] sm:$0xf]
    %v93 = vld [vmem:[#allocation5 + $0x4] sm:$0xf]
    %v94 = vld [vmem:[#allocation5 + $0x8] sm:$0xf]
    %v95 = vld [vmem:[#allocation5 + $0xc] sm:$0xf]
    %v96 = vld [vmem:[#allocation5 + $0x10] sm:$0xf]
    %v97 = vld [vmem:[#allocation5 + $0x14] sm:$0xf]
    %v98 = vld [vmem:[#allocation5 + $0x18] sm:$0xf]
    %v99 = vld [vmem:[#allocation5 + $0x1c] sm:$0xf]
    %v100 = vld [vmem:[#allocation5 + $0x20] sm:$0xf]
    %v101 = vld [vmem:[#allocation5 + $0x24] sm:$0xf]
    %v102 = vld [vmem:[#allocation5 + $0x28] sm:$0xf]
    %v103 = vld [vmem:[#allocation5 + $0x2c] sm:$0xf]
    %v104 = vld [vmem:[#allocation5 + $0x30] sm:$0xf]
    %v105 = vld [vmem:[#allocation5 + $0x34] sm:$0xf]
    %v106 = vld [vmem:[#allocation5 + $0x38] sm:$0xf]
    %v107 = vld [vmem:[#allocation5 + $0x3c] sm:$0xf]
    %v108 = vld [vmem:[%s2] sm:$0x1]
    %v110 = vperm.slane %v108, 0
    %v114 = vunpack.c.l.b16 %v90
    %v115 = vunpack.c.l.b16 %v91
    %v116 = vpack.c.b16 %v115, %v114
    %v134 = vunpack.c.l.b16 %v92
    %v135 = vunpack.c.l.b16 %v93
    %v136 = vunpack.c.l.b16 %v94
    %v137 = vunpack.c.l.b16 %v95
    %v138 = vunpack.c.l.b16 %v96
    %v139 = vunpack.c.l.b16 %v97
    %v140 = vunpack.c.l.b16 %v98
    %v141 = vunpack.c.l.b16 %v99
    %v142 = vunpack.c.l.b16 %v100
    %v143 = vunpack.c.l.b16 %v101
    %v144 = vunpack.c.l.b16 %v102
    %v145 = vunpack.c.l.b16 %v103
    %v146 = vunpack.c.l.b16 %v104
    %v147 = vunpack.c.l.b16 %v105
    %v148 = vunpack.c.l.b16 %v106
    %v149 = vunpack.c.l.b16 %v107
    %v150 = vpack.c.b16 %v135, %v134
    %v151 = vpack.c.b16 %v137, %v136
    %v152 = vpack.c.b16 %v139, %v138
    %v153 = vpack.c.b16 %v141, %v140
    %v154 = vpack.c.b16 %v143, %v142
    %v155 = vpack.c.b16 %v145, %v144
    %v156 = vpack.c.b16 %v147, %v146
    %v157 = vpack.c.b16 %v149, %v148
    %166 = vmatpush.bf16.msra.mxu0 %v157
    %167 = vmatpush.bf16.msra.mxu0 %v156
    %168 = vmatpush.bf16.msra.mxu0 %v155
    %169 = vmatpush.bf16.msra.mxu0 %v154
    %170 = vmatpush.bf16.msra.mxu0 %v153
    %171 = vmatpush.bf16.msra.mxu0 %v152
    %172 = vmatpush.bf16.msra.mxu0 %v151
    %173 = vmatpush.bf16.msra.mxu0 %v150
    %174 = vmatmul.bf16.gmra.mxu0 %v116
    %v175 = vpop.f32.mrf.mxu0
    %v176 = vadd.f32 %v110, %v175
    %v177 = vpop.f32.mrf.mxu0
    %v178 = vadd.f32 %v110, %v177
    %179 = vdwg.mxu0
    %v180 = vmax.f32 %v176, 0.0
    %v181 = vmax.f32 %v178, 0.0
    %v182 = vpack.c.bf16 %v180, %v180
    %v183 = vpack.c.bf16 %v181, %v181
    %v184 = vld [vmem:[#allocation7] sm:$0xf]
    %v185 = vld [vmem:[#allocation7 + $0x4] sm:$0xf]
    %v186 = vld [vmem:[#allocation7 + $0x8] sm:$0xf]
    %v187 = vld [vmem:[#allocation7 + $0xc] sm:$0xf]
    %v188 = vld [vmem:[#allocation7 + $0x10] sm:$0xf]
    %v189 = vld [vmem:[#allocation7 + $0x14] sm:$0xf]
    %v190 = vld [vmem:[#allocation7 + $0x18] sm:$0xf]
    %v191 = vld [vmem:[#allocation7 + $0x1c] sm:$0xf]
    %v192 = vld [vmem:[#allocation7 + $0x20] sm:$0xf]
    %v193 = vld [vmem:[#allocation7 + $0x24] sm:$0xf]
    %v194 = vld [vmem:[#allocation7 + $0x28] sm:$0xf]
    %v195 = vld [vmem:[#allocation7 + $0x2c] sm:$0xf]
    %v196 = vld [vmem:[#allocation7 + $0x30] sm:$0xf]
    %v197 = vld [vmem:[#allocation7 + $0x34] sm:$0xf]
    %v198 = vld [vmem:[#allocation7 + $0x38] sm:$0xf]
    %v199 = vld [vmem:[#allocation7 + $0x3c] sm:$0xf]
    %v200 = vld [vmem:[#allocation7 + $0x40] sm:$0xf]
    %v201 = vld [vmem:[#allocation7 + $0x44] sm:$0xf]
    %v202 = vld [vmem:[#allocation7 + $0x48] sm:$0xf]
    %v203 = vld [vmem:[#allocation7 + $0x4c] sm:$0xf]
    %v204 = vld [vmem:[#allocation7 + $0x50] sm:$0xf]
    %v205 = vld [vmem:[#allocation7 + $0x54] sm:$0xf]
    %v206 = vld [vmem:[#allocation7 + $0x58] sm:$0xf]
    %v207 = vld [vmem:[#allocation7 + $0x5c] sm:$0xf]
    %v208 = vld [vmem:[#allocation7 + $0x60] sm:$0xf]
    %v209 = vld [vmem:[#allocation7 + $0x64] sm:$0xf]
    %v210 = vld [vmem:[#allocation7 + $0x68] sm:$0xf]
    %v211 = vld [vmem:[#allocation7 + $0x6c] sm:$0xf]
    %v212 = vld [vmem:[#allocation7 + $0x70] sm:$0xf]
    %v213 = vld [vmem:[#allocation7 + $0x74] sm:$0xf]
    %v214 = vld [vmem:[#allocation7 + $0x78] sm:$0xf]
    %v215 = vld [vmem:[#allocation7 + $0x7c] sm:$0xf]
    %v216 = vld [vmem:[%s4] sm:$0x1]
    %v218 = vperm.slane %v216, 0
    %v252 = vunpack.c.l.b16 %v184
    %v253 = vunpack.c.l.b16 %v185
    %v254 = vunpack.c.l.b16 %v186
    %v255 = vunpack.c.l.b16 %v187
    %v256 = vunpack.c.l.b16 %v188
    %v257 = vunpack.c.l.b16 %v189
    %v258 = vunpack.c.l.b16 %v190
    %v259 = vunpack.c.l.b16 %v191
    %v260 = vunpack.c.l.b16 %v192
    %v261 = vunpack.c.l.b16 %v193
    %v262 = vunpack.c.l.b16 %v194
    %v263 = vunpack.c.l.b16 %v195
    %v264 = vunpack.c.l.b16 %v196
    %v265 = vunpack.c.l.b16 %v197
    %v266 = vunpack.c.l.b16 %v198
    %v267 = vunpack.c.l.b16 %v199
    %v268 = vunpack.c.l.b16 %v200
    %v269 = vunpack.c.l.b16 %v201
    %v270 = vunpack.c.l.b16 %v202
    %v271 = vunpack.c.l.b16 %v203
    %v272 = vunpack.c.l.b16 %v204
    %v273 = vunpack.c.l.b16 %v205
    %v274 = vunpack.c.l.b16 %v206
    %v275 = vunpack.c.l.b16 %v207
    %v276 = vunpack.c.l.b16 %v208
    %v277 = vunpack.c.l.b16 %v209
    %v278 = vunpack.c.l.b16 %v210
    %v279 = vunpack.c.l.b16 %v211
    %v280 = vunpack.c.l.b16 %v212
    %v281 = vunpack.c.l.b16 %v213
    %v282 = vunpack.c.l.b16 %v214
    %v283 = vunpack.c.l.b16 %v215
    %v284 = vpack.c.b16 %v253, %v252
    %v285 = vpack.c.b16 %v255, %v254
    %v286 = vpack.c.b16 %v257, %v256
    %v287 = vpack.c.b16 %v259, %v258
    %v288 = vpack.c.b16 %v261, %v260
    %v289 = vpack.c.b16 %v263, %v262
    %v290 = vpack.c.b16 %v265, %v264
    %v291 = vpack.c.b16 %v267, %v266
    %v292 = vpack.c.b16 %v269, %v268
    %v293 = vpack.c.b16 %v271, %v270
    %v294 = vpack.c.b16 %v273, %v272
    %v295 = vpack.c.b16 %v275, %v274
    %v296 = vpack.c.b16 %v277, %v276
    %v297 = vpack.c.b16 %v279, %v278
    %v298 = vpack.c.b16 %v281, %v280
    %v299 = vpack.c.b16 %v283, %v282
    %316 = vmatpush.bf16.msra.mxu0 %v291
    %317 = vmatpush.bf16.msra.mxu0 %v290
    %318 = vmatpush.bf16.msra.mxu0 %v289
    %319 = vmatpush.bf16.msra.mxu0 %v288
    %320 = vmatpush.bf16.msra.mxu0 %v287
    %321 = vmatpush.bf16.msra.mxu0 %v286
    %322 = vmatpush.bf16.msra.mxu0 %v285
    %323 = vmatpush.bf16.msra.mxu0 %v284
    %324 = vmatmul.bf16.gmra.mxu0 %v182
    %v325 = vpop.f32.mrf.mxu0
    %v326 = vadd.f32 %v218, %v325
    %v327 = vpop.f32.mrf.mxu0
    %328 = vdwg.mxu0
    %329 = vmatpush.bf16.msra.mxu0 %v299
    %330 = vmatpush.bf16.msra.mxu0 %v298
    %331 = vmatpush.bf16.msra.mxu0 %v297
    %332 = vmatpush.bf16.msra.mxu0 %v296
    %333 = vmatpush.bf16.msra.mxu0 %v295
    %334 = vmatpush.bf16.msra.mxu0 %v294
    %335 = vmatpush.bf16.msra.mxu0 %v293
    %336 = vmatpush.bf16.msra.mxu0 %v292
    %337 = vmatmul.bf16.gmra.mxu0 %v183
    %v338 = vpop.f32.mrf.mxu0
    %v339 = vadd.f32 %v326, %v338
    %v340 = vpop.f32.mrf.mxu0
    %341 = vdwg.mxu0
    %v342 = vmax.f32 %v339, 0.0
    %v343 = vpack.c.bf16 %v342, %v342
    %v344 = vld [vmem:[#allocation8] sm:$0xf]
    %v345 = vld [vmem:[#allocation8 + $0x4] sm:$0xf]
    %v346 = vld [vmem:[#allocation8 + $0x8] sm:$0xf]
    %v347 = vld [vmem:[#allocation8 + $0xc] sm:$0xf]
    %v348 = vld [vmem:[#allocation8 + $0x10] sm:$0xf]
    %v349 = vld [vmem:[#allocation8 + $0x14] sm:$0xf]
    %v350 = vld [vmem:[#allocation8 + $0x18] sm:$0xf]
    %v351 = vld [vmem:[#allocation8 + $0x1c] sm:$0xf]
    %v352 = vld [vmem:[#allocation8 + $0x20] sm:$0xf]
    %v353 = vld [vmem:[#allocation8 + $0x24] sm:$0xf]
    %v354 = vld [vmem:[#allocation8 + $0x28] sm:$0xf]
    %v355 = vld [vmem:[#allocation8 + $0x2c] sm:$0xf]
    %v356 = vld [vmem:[#allocation8 + $0x30] sm:$0xf]
    %v357 = vld [vmem:[#allocation8 + $0x34] sm:$0xf]
    %v358 = vld [vmem:[#allocation8 + $0x38] sm:$0xf]
    %v359 = vld [vmem:[#allocation8 + $0x3c] sm:$0xf]
    %v360 = vld [vmem:[%s6] sm:$0x1]
    %v362 = vperm.slane %v360, 0
    %v380 = vunpack.c.l.b16 %v344
    %v381 = vunpack.c.l.b16 %v345
    %v382 = vunpack.c.l.b16 %v346
    %v383 = vunpack.c.l.b16 %v347
    %v384 = vunpack.c.l.b16 %v348
    %v385 = vunpack.c.l.b16 %v349
    %v386 = vunpack.c.l.b16 %v350
    %v387 = vunpack.c.l.b16 %v351
    %v388 = vunpack.c.l.b16 %v352
    %v389 = vunpack.c.l.b16 %v353
    %v390 = vunpack.c.l.b16 %v354
    %v391 = vunpack.c.l.b16 %v355
    %v392 = vunpack.c.l.b16 %v356
    %v393 = vunpack.c.l.b16 %v357
    %v394 = vunpack.c.l.b16 %v358
    %v395 = vunpack.c.l.b16 %v359
    %v396 = vpack.c.b16 %v381, %v380
    %v397 = vpack.c.b16 %v383, %v382
    %v398 = vpack.c.b16 %v385, %v384
    %v399 = vpack.c.b16 %v387, %v386
    %v400 = vpack.c.b16 %v389, %v388
    %v401 = vpack.c.b16 %v391, %v390
    %v402 = vpack.c.b16 %v393, %v392
    %v403 = vpack.c.b16 %v395, %v394
    %412 = vmatpush.bf16.msra.mxu0 %v403
    %413 = vmatpush.bf16.msra.mxu0 %v402
    %414 = vmatpush.bf16.msra.mxu0 %v401
    %415 = vmatpush.bf16.msra.mxu0 %v400
    %416 = vmatpush.bf16.msra.mxu0 %v399
    %417 = vmatpush.bf16.msra.mxu0 %v398
    %418 = vmatpush.bf16.msra.mxu0 %v397
    %419 = vmatpush.bf16.msra.mxu0 %v396
    %420 = vmatmul.bf16.gmra.mxu0 %v343
    %v421 = vpop.f32.mrf.mxu0
    %v422 = vadd.f32 %v362, %v421
    %v423 = vpop.f32.mrf.mxu0
    %424 = vdwg.mxu0
    %425 = vst [vmem:[#allocation10] sm:$0xff] %v422
    // Predicated region
    $region46: #{tpu_custom_call.1} parent=1 // pred_check
      _
    $region47: #{tpu_custom_call.1} parent=1 // pred_check_branch
      %427 = sbr.rel (0) target = $region49
    $region48: #{tpu_custom_call.1} parent=1 // pred_region
      %429 = vsyncadd [#allocation4], 0
      %s431 = sshll.u32 [#allocation10], 4
      %s432 = int_to_ptr.vmem [resolvable:$true] %s431
      %s433 = sshll.u32 %s7, 4
      %s434 = int_to_ptr.hbm [resolvable:$true] %s433
      %436 = dma.vmem_to_hbm [thread:$0]  %s432, 128, %s434, [#allocation4]
    $region49: #{tpu_custom_call.1} parent=1 // pred_fallthru
      _
    // Predicated region
    $region50: #{tpu_custom_call.1} parent=1 // pred_check
      _
    $region51: #{tpu_custom_call.1} parent=1 // pred_check_branch
      %438 = sbr.rel (0) target = $region53
    $region52: #{tpu_custom_call.1} parent=1 // pred_region
      %440 = dma.done [#allocation4], 128
    $region53: #{tpu_custom_call.1} parent=1 // pred_fallthru
      _
    %441 = vsyncpa [#allocation3], 1
    %442 = vsyncpa [#allocation6], 1
    %443 = vsyncpa [#allocation9], 1
    %444 = vsyncpa [#allocation4], 1

</llo_original>
